<compile_context>
chip_gen: v7x
topology: tpu7x:2x2x1
jax: 0.10.0
libtpu: 0.0.40
codegen_flags: <defaults>
</compile_context>

<pallas_src>
import math

import jax
import jax.numpy as jnp
import jax.scipy.stats as jsp_stats
from jax.experimental import pallas as pl
from jax.experimental.pallas import tpu as pltpu


# ----------------------------------------------------------------------------
# Wrapper-side layout: adaptive_avg_pool2d (evenly dividing) as reshape+mean,
# flatten spatial, transpose to channels-last (B, L, C), cast to bf16.
# ----------------------------------------------------------------------------
def _pool_flatten_cl(x, H2, W2):
    B, C, H1, W1 = x.shape
    if H1 > H2:
        # TODO(synk): non-evenly-divisible adaptive_avg_pool2d windows are not reproduced.
        kh, kw = H1 // H2, W1 // W2
        x = x.reshape(B, C, H2, kh, W2, kw).mean(axis=(3, 5))
    x = x.reshape(B, C, H2 * W2)
    return jnp.transpose(x, (0, 2, 1)).astype(jnp.bfloat16)      # (B, L, C)


def _flatten_cl(x):
    B, C, H, W = x.shape
    return jnp.transpose(x.reshape(B, C, H * W), (0, 2, 1)).astype(jnp.bfloat16)


# ----------------------------------------------------------------------------
# Pallas kernel: one grid step == one batch element, all stage pairs fused.
# Refs per pair i: (f1_student, f2_student, f1_teacher, f2_teacher); last ref
# is the (1,1,1) partial-loss output block for this batch element.
# ----------------------------------------------------------------------------
def _make_lcr_kernel(num_pairs, consts):
    def top_eig_unscaled(f1_ref, f2_ref):
        # f1: (1, L, C1), f2: (1, L, C2) bf16; all arithmetic in f32 (v5e-safe).
        a1 = f1_ref[0].astype(jnp.float32)                    # (L, C1)
        a2 = f2_ref[0].astype(jnp.float32)                    # (L, C2)
        u = jnp.sum(a1, axis=1, keepdims=True)                # (L, 1)  lane reduce
        w = jnp.sum(a2 * u, axis=0, keepdims=True)            # (1, C2) sublane reduce
        z = jnp.sum(a2 * w, axis=1, keepdims=True)            # (L, 1)  lane reduce
        m = jnp.sum(a1 * z, axis=0, keepdims=True)            # (1, C1) == L^2 * (K @ 1)
        n = jnp.sqrt(jnp.sum(m * m, axis=1, keepdims=True))   # (1, 1)  == L^2 * ||K @ 1||
        # PyTorch TopEigenvalue (1 power iteration, v0 = ones): value = sqrt(||K @ 1||)
        # since v = m/||m|| has unit norm after the step.  Returned value is
        # L * TopEigenvalue; the 1/L is folded into consts[i] below.
        return jnp.sqrt(n)

    def kernel(*refs):
        out_ref = refs[-1]
        loss = jnp.zeros((1, 1), jnp.float32)
        for i in range(num_pairs):
            eig_s = top_eig_unscaled(refs[4 * i + 0], refs[4 * i + 1])
            eig_t = top_eig_unscaled(refs[4 * i + 2], refs[4 * i + 3])
            d = eig_s - eig_t
            # consts[i] = weight_i / (B * L_i^2): deferred 1/L scale, the MSE
            # 1/B mean, and the per-pair 1 / 2**(N-1-i) weight, all folded.
            loss = loss + d * d * jnp.float32(consts[i])
        out_ref[...] = loss[None]                             # (1, 1, 1)

    return kernel


def lcr_loss_from_features(bin_feats, fp_feats):
    """LCR loss over all (i, i+1) stage pairs; one pallas_call, grid over batch."""
    feat_num = len(bin_feats)
    num_pairs = feat_num - 1
    if num_pairs <= 0:
        return jnp.float32(0.0)
    B = bin_feats[0].shape[0]

    inputs, consts = [], []
    for i in range(num_pairs):
        s1, s2 = bin_feats[i], bin_feats[i + 1]
        t1 = jax.lax.stop_gradient(fp_feats[i])          # teacher features are detached
        t2 = jax.lax.stop_gradient(fp_feats[i + 1])
        H2, W2 = s2.shape[2], s2.shape[3]
        L = H2 * W2
        inputs += [
            _pool_flatten_cl(s1, H2, W2),                # (B, L, C1) student
            _flatten_cl(s2),                             # (B, L, C2) student
            _pool_flatten_cl(t1, H2, W2),                # (B, L, C1) teacher
            _flatten_cl(t2),                             # (B, L, C2) teacher
        ]
        weight = 1.0 / 2 ** (feat_num - i - 1)
        consts.append(weight / (B * L * L))

    kernel = _make_lcr_kernel(num_pairs, consts)

    partial = pl.pallas_call(
        kernel,
        out_shape=jax.ShapeDtypeStruct((B, 1, 1), jnp.float32),
        grid=(B,),
        in_specs=[pl.BlockSpec((1,) + a.shape[1:], lambda b: (b, 0, 0)) for a in inputs],
        out_specs=pl.BlockSpec((1, 1, 1), lambda b: (b, 0, 0)),
        compiler_params=pltpu.CompilerParams(dimension_semantics=("parallel",)),
    )(*inputs)
    return jnp.sum(partial)


# ----------------------------------------------------------------------------
# Glue: synthetic stand-ins for the external fp_net / net backbones
# ----------------------------------------------------------------------------
def make_net_params(key, in_ch, stage_channels):
    """Deterministic 1x1-conv weights for a tiny multi-stage feature extractor."""
    params = []
    c_prev = in_ch
    for c in stage_channels:
        key, sub = jax.random.split(key)
        w = jax.random.normal(sub, (c, c_prev), jnp.float32) * math.sqrt(2.0 / c_prev)
        params.append(w)
        c_prev = c
    return params


def extract_features(params, x):
    """Stand-in for fp_net.extract_feature / net.scaleable_feature (NCHW)."""
    feats = []
    h = x
    for w in params:
        h = jnp.einsum("oc,bchw->bohw", w, h)                        # 1x1 conv
        h = jax.nn.relu(h)                                           # preReLU=False -> post-ReLU
        B, C, H, W = h.shape
        h = h.reshape(B, C, H // 2, 2, W // 2, 2).mean(axis=(3, 5))  # 2x2 avg pool
        feats.append(h)
    return feats


# ----------------------------------------------------------------------------
# LCR.__init__ parameters (Connectors + margins).  NOTE: the PyTorch forward()
# never uses them; they are initialized here only for parity with __init__.
# ----------------------------------------------------------------------------
def build_connector_params(key, t_ch, s_ch):
    w = jax.random.normal(key, (t_ch, s_ch, 1, 1), jnp.float32) * math.sqrt(2.0 / t_ch)
    return w, jnp.ones((t_ch,), jnp.float32), jnp.zeros((t_ch,), jnp.float32)


def get_margin_from_bn(gamma, beta):
    s = jnp.abs(gamma)
    m = beta
    cdf = jsp_stats.norm.cdf(-m / s)
    margin = jnp.where(
        cdf > 0.001,
        -s * jnp.exp(-(m / s) ** 2 / 2) / math.sqrt(2 * math.pi) / cdf + m,
        -3.0 * s,
    )
    return margin[None, :, None, None]


# ----------------------------------------------------------------------------
# LCR forward
# ----------------------------------------------------------------------------
def lcr_forward(x, fp_params, net_params):
    fp_feats = extract_features(fp_params, x)      # teacher (detached inside loss)
    bin_feats = extract_features(net_params, x)    # student
    return lcr_loss_from_features(bin_feats, fp_feats)


# ----------------------------------------------------------------------------
# Pure-JAX reference mirroring the PyTorch forward (same bf16-rounded operands)
# ----------------------------------------------------------------------------
def _ref_pool_flat(x, H2, W2):
    B, C, H1, W1 = x.shape
    if H1 > H2:
        kh, kw = H1 // H2, W1 // W2
        x = x.reshape(B, C, H2, kh, W2, kw).mean(axis=(3, 5))
    return x.reshape(B, C, -1)


def lcr_reference(bin_feats, fp_feats):
    feat_num = len(bin_feats)

    def retention_matrix(fm1, fm2):
        H2, W2 = fm2.shape[2], fm2.shape[3]
        f1 = _ref_pool_flat(fm1, H2, W2).astype(jnp.bfloat16).astype(jnp.float32)
        f2 = fm2.reshape(fm2.shape[0], fm2.shape[1], -1).astype(jnp.bfloat16).astype(jnp.float32)
        return jnp.einsum("bcl,bdl->bcd", f1, f2) / f1.shape[2]

    def top_eig(K):
        v = jnp.ones((K.shape[0], K.shape[1], 1), jnp.float32)
        m = jnp.matmul(K, v)
        n = jnp.linalg.norm(m, axis=1, keepdims=True)
        v = m / n
        return jnp.sqrt(n / jnp.linalg.norm(v, axis=1, keepdims=True))

    loss = jnp.float32(0.0)
    for i in range(feat_num - 1):
        rm_b = retention_matrix(bin_feats[i], bin_feats[i + 1])
        rm_t = retention_matrix(fp_feats[i], fp_feats[i + 1])
        K_b = jnp.matmul(rm_b, jnp.swapaxes(rm_b, 1, 2))
        K_t = jnp.matmul(rm_t, jnp.swapaxes(rm_t, 1, 2))
        loss = loss + jnp.mean((top_eig(K_b) - top_eig(K_t)) ** 2) / 2 ** (feat_num - i - 1)
    return loss


if __name__ == "__main__":
    key = jax.random.PRNGKey(0)
    kx, kfp, knet, kcon = jax.random.split(key, 4)

    B, C_in, H, W = 2, 4, 16, 16
    stage_channels = [8, 16, 32]

    x = jax.random.normal(kx, (B, C_in, H, W), jnp.float32)
    fp_params = make_net_params(kfp, C_in, stage_channels)
    net_params = make_net_params(knet, C_in, stage_channels)

    # __init__-time parameters (unused by forward, kept for parity)
    connectors = []
    for t_c in stage_channels:
        kcon, sub = jax.random.split(kcon)
        connectors.append(build_connector_params(sub, t_c, t_c))
    margins = [get_margin_from_bn(g, b) for _, g, b in connectors]
    del connectors, margins

    loss = jax.jit(lambda inp: lcr_forward(inp, fp_params, net_params))(x)
    jax.block_until_ready(loss)
    assert loss.shape == () and bool(jnp.isfinite(loss))

    # Numerical check against a PyTorch-mirroring pure-JAX reference.
    fp_feats = extract_features(fp_params, x)
    bin_feats = extract_features(net_params, x)
    ref = float(lcr_reference(bin_feats, fp_feats))
    got = float(loss)
    assert abs(got - ref) <= 5e-2 * abs(ref) + 1e-3, (got, ref)

    print("KERNEL_OK")
</pallas_src>

<mosaic_0001>
module attributes {stable_mosaic.version = 11 : i64} {
  func.func @kernel(%arg0: i32, %arg1: memref<1x16x8xbf16, #tpu.memory_space<vmem>>, %arg2: memref<1x16x16xbf16, #tpu.memory_space<vmem>>, %arg3: memref<1x16x8xbf16, #tpu.memory_space<vmem>>, %arg4: memref<1x16x16xbf16, #tpu.memory_space<vmem>>, %arg5: memref<1x4x16xbf16, #tpu.memory_space<vmem>>, %arg6: memref<1x4x32xbf16, #tpu.memory_space<vmem>>, %arg7: memref<1x4x16xbf16, #tpu.memory_space<vmem>>, %arg8: memref<1x4x32xbf16, #tpu.memory_space<vmem>>, %arg9: memref<1x1x1xf32, #tpu.memory_space<vmem>>) attributes {dimension_semantics = [#tpu.dimension_semantics<parallel>], iteration_bounds = array<i64: 2>, scalar_prefetch = 0 : i64, scratch_operands = 0 : i64, tpu.core_type = #tpu.core_type<tc>, window_params = [{transform_indices = @transform_0, window_bounds = array<i64: 1, 16, 8>}, {transform_indices = @transform_1, window_bounds = array<i64: 1, 16, 16>}, {transform_indices = @transform_2, window_bounds = array<i64: 1, 16, 8>}, {transform_indices = @transform_3, window_bounds = array<i64: 1, 16, 16>}, {transform_indices = @transform_4, window_bounds = array<i64: 1, 4, 16>}, {transform_indices = @transform_5, window_bounds = array<i64: 1, 4, 32>}, {transform_indices = @transform_6, window_bounds = array<i64: 1, 4, 16>}, {transform_indices = @transform_7, window_bounds = array<i64: 1, 4, 32>}, {transform_indices = @transform_8, window_bounds = array<i64: 1, 1, 1>}]} {
    %cst = arith.constant 0.000000e+00 : f32
    %0 = vector.broadcast %cst : f32 to vector<1x1xf32>
    %c0 = arith.constant 0 : index
    %c0_0 = arith.constant 0 : index
    %c0_1 = arith.constant 0 : index
    %1 = vector.load %arg1[%c0, %c0_0, %c0_1] : memref<1x16x8xbf16, #tpu.memory_space<vmem>>, vector<1x16x8xbf16>
    %2 = vector.shape_cast %1 : vector<1x16x8xbf16> to vector<16x8xbf16>
    %3 = arith.extf %2 : vector<16x8xbf16> to vector<16x8xf32>
    %c0_2 = arith.constant 0 : index
    %c0_3 = arith.constant 0 : index
    %c0_4 = arith.constant 0 : index
    %4 = vector.load %arg2[%c0_2, %c0_3, %c0_4] : memref<1x16x16xbf16, #tpu.memory_space<vmem>>, vector<1x16x16xbf16>
    %5 = vector.shape_cast %4 : vector<1x16x16xbf16> to vector<16x16xbf16>
    %6 = arith.extf %5 : vector<16x16xbf16> to vector<16x16xf32>
    %cst_5 = arith.constant dense<0.000000e+00> : vector<16xf32>
    %7 = vector.multi_reduction <add>, %3, %cst_5 [1] : vector<16x8xf32> to vector<16xf32>
    %8 = vector.shape_cast %7 : vector<16xf32> to vector<16x1xf32>
    %9 = vector.broadcast %8 : vector<16x1xf32> to vector<16x16xf32>
    %10 = arith.mulf %6, %9 : vector<16x16xf32>
    %cst_6 = arith.constant dense<0.000000e+00> : vector<16xf32>
    %11 = vector.multi_reduction <add>, %10, %cst_6 [0] : vector<16x16xf32> to vector<16xf32>
    %12 = vector.shape_cast %11 : vector<16xf32> to vector<1x16xf32>
    %13 = vector.broadcast %12 : vector<1x16xf32> to vector<16x16xf32>
    %14 = arith.mulf %6, %13 : vector<16x16xf32>
    %cst_7 = arith.constant dense<0.000000e+00> : vector<16xf32>
    %15 = vector.multi_reduction <add>, %14, %cst_7 [1] : vector<16x16xf32> to vector<16xf32>
    %16 = vector.shape_cast %15 : vector<16xf32> to vector<16x1xf32>
    %17 = vector.broadcast %16 : vector<16x1xf32> to vector<16x8xf32>
    %18 = arith.mulf %3, %17 : vector<16x8xf32>
    %cst_8 = arith.constant dense<0.000000e+00> : vector<8xf32>
    %19 = vector.multi_reduction <add>, %18, %cst_8 [0] : vector<16x8xf32> to vector<8xf32>
    %20 = vector.shape_cast %19 : vector<8xf32> to vector<1x8xf32>
    %21 = arith.mulf %20, %20 : vector<1x8xf32>
    %cst_9 = arith.constant dense<0.000000e+00> : vector<1xf32>
    %22 = vector.multi_reduction <add>, %21, %cst_9 [1] : vector<1x8xf32> to vector<1xf32>
    %23 = vector.shape_cast %22 : vector<1xf32> to vector<1x1xf32>
    %24 = math.sqrt %23 : vector<1x1xf32>
    %25 = math.sqrt %24 : vector<1x1xf32>
    %c0_10 = arith.constant 0 : index
    %c0_11 = arith.constant 0 : index
    %c0_12 = arith.constant 0 : index
    %26 = vector.load %arg3[%c0_10, %c0_11, %c0_12] : memref<1x16x8xbf16, #tpu.memory_space<vmem>>, vector<1x16x8xbf16>
    %27 = vector.shape_cast %26 : vector<1x16x8xbf16> to vector<16x8xbf16>
    %28 = arith.extf %27 : vector<16x8xbf16> to vector<16x8xf32>
    %c0_13 = arith.constant 0 : index
    %c0_14 = arith.constant 0 : index
    %c0_15 = arith.constant 0 : index
    %29 = vector.load %arg4[%c0_13, %c0_14, %c0_15] : memref<1x16x16xbf16, #tpu.memory_space<vmem>>, vector<1x16x16xbf16>
    %30 = vector.shape_cast %29 : vector<1x16x16xbf16> to vector<16x16xbf16>
    %31 = arith.extf %30 : vector<16x16xbf16> to vector<16x16xf32>
    %cst_16 = arith.constant dense<0.000000e+00> : vector<16xf32>
    %32 = vector.multi_reduction <add>, %28, %cst_16 [1] : vector<16x8xf32> to vector<16xf32>
    %33 = vector.shape_cast %32 : vector<16xf32> to vector<16x1xf32>
    %34 = vector.broadcast %33 : vector<16x1xf32> to vector<16x16xf32>
    %35 = arith.mulf %31, %34 : vector<16x16xf32>
    %cst_17 = arith.constant dense<0.000000e+00> : vector<16xf32>
    %36 = vector.multi_reduction <add>, %35, %cst_17 [0] : vector<16x16xf32> to vector<16xf32>
    %37 = vector.shape_cast %36 : vector<16xf32> to vector<1x16xf32>
    %38 = vector.broadcast %37 : vector<1x16xf32> to vector<16x16xf32>
    %39 = arith.mulf %31, %38 : vector<16x16xf32>
    %cst_18 = arith.constant dense<0.000000e+00> : vector<16xf32>
    %40 = vector.multi_reduction <add>, %39, %cst_18 [1] : vector<16x16xf32> to vector<16xf32>
    %41 = vector.shape_cast %40 : vector<16xf32> to vector<16x1xf32>
    %42 = vector.broadcast %41 : vector<16x1xf32> to vector<16x8xf32>
    %43 = arith.mulf %28, %42 : vector<16x8xf32>
    %cst_19 = arith.constant dense<0.000000e+00> : vector<8xf32>
    %44 = vector.multi_reduction <add>, %43, %cst_19 [0] : vector<16x8xf32> to vector<8xf32>
    %45 = vector.shape_cast %44 : vector<8xf32> to vector<1x8xf32>
    %46 = arith.mulf %45, %45 : vector<1x8xf32>
    %cst_20 = arith.constant dense<0.000000e+00> : vector<1xf32>
    %47 = vector.multi_reduction <add>, %46, %cst_20 [1] : vector<1x8xf32> to vector<1xf32>
    %48 = vector.shape_cast %47 : vector<1xf32> to vector<1x1xf32>
    %49 = math.sqrt %48 : vector<1x1xf32>
    %50 = math.sqrt %49 : vector<1x1xf32>
    %51 = arith.subf %25, %50 : vector<1x1xf32>
    %52 = arith.mulf %51, %51 : vector<1x1xf32>
    %cst_21 = arith.constant 4.8828125E-4 : f32
    %53 = vector.broadcast %cst_21 : f32 to vector<1x1xf32>
    %54 = arith.mulf %52, %53 : vector<1x1xf32>
    %55 = arith.addf %0, %54 : vector<1x1xf32>
    %c0_22 = arith.constant 0 : index
    %c0_23 = arith.constant 0 : index
    %c0_24 = arith.constant 0 : index
    %56 = vector.load %arg5[%c0_22, %c0_23, %c0_24] : memref<1x4x16xbf16, #tpu.memory_space<vmem>>, vector<1x4x16xbf16>
    %57 = vector.shape_cast %56 : vector<1x4x16xbf16> to vector<4x16xbf16>
    %58 = arith.extf %57 : vector<4x16xbf16> to vector<4x16xf32>
    %c0_25 = arith.constant 0 : index
    %c0_26 = arith.constant 0 : index
    %c0_27 = arith.constant 0 : index
    %59 = vector.load %arg6[%c0_25, %c0_26, %c0_27] : memref<1x4x32xbf16, #tpu.memory_space<vmem>>, vector<1x4x32xbf16>
    %60 = vector.shape_cast %59 : vector<1x4x32xbf16> to vector<4x32xbf16>
    %61 = arith.extf %60 : vector<4x32xbf16> to vector<4x32xf32>
    %cst_28 = arith.constant dense<0.000000e+00> : vector<4xf32>
    %62 = vector.multi_reduction <add>, %58, %cst_28 [1] : vector<4x16xf32> to vector<4xf32>
    %63 = vector.shape_cast %62 : vector<4xf32> to vector<4x1xf32>
    %64 = vector.broadcast %63 : vector<4x1xf32> to vector<4x32xf32>
    %65 = arith.mulf %61, %64 : vector<4x32xf32>
    %cst_29 = arith.constant dense<0.000000e+00> : vector<32xf32>
    %66 = vector.multi_reduction <add>, %65, %cst_29 [0] : vector<4x32xf32> to vector<32xf32>
    %67 = vector.shape_cast %66 : vector<32xf32> to vector<1x32xf32>
    %68 = vector.broadcast %67 : vector<1x32xf32> to vector<4x32xf32>
    %69 = arith.mulf %61, %68 : vector<4x32xf32>
    %cst_30 = arith.constant dense<0.000000e+00> : vector<4xf32>
    %70 = vector.multi_reduction <add>, %69, %cst_30 [1] : vector<4x32xf32> to vector<4xf32>
    %71 = vector.shape_cast %70 : vector<4xf32> to vector<4x1xf32>
    %72 = vector.broadcast %71 : vector<4x1xf32> to vector<4x16xf32>
    %73 = arith.mulf %58, %72 : vector<4x16xf32>
    %cst_31 = arith.constant dense<0.000000e+00> : vector<16xf32>
    %74 = vector.multi_reduction <add>, %73, %cst_31 [0] : vector<4x16xf32> to vector<16xf32>
    %75 = vector.shape_cast %74 : vector<16xf32> to vector<1x16xf32>
    %76 = arith.mulf %75, %75 : vector<1x16xf32>
    %cst_32 = arith.constant dense<0.000000e+00> : vector<1xf32>
    %77 = vector.multi_reduction <add>, %76, %cst_32 [1] : vector<1x16xf32> to vector<1xf32>
    %78 = vector.shape_cast %77 : vector<1xf32> to vector<1x1xf32>
    %79 = math.sqrt %78 : vector<1x1xf32>
    %80 = math.sqrt %79 : vector<1x1xf32>
    %c0_33 = arith.constant 0 : index
    %c0_34 = arith.constant 0 : index
    %c0_35 = arith.constant 0 : index
    %81 = vector.load %arg7[%c0_33, %c0_34, %c0_35] : memref<1x4x16xbf16, #tpu.memory_space<vmem>>, vector<1x4x16xbf16>
    %82 = vector.shape_cast %81 : vector<1x4x16xbf16> to vector<4x16xbf16>
    %83 = arith.extf %82 : vector<4x16xbf16> to vector<4x16xf32>
    %c0_36 = arith.constant 0 : index
    %c0_37 = arith.constant 0 : index
    %c0_38 = arith.constant 0 : index
    %84 = vector.load %arg8[%c0_36, %c0_37, %c0_38] : memref<1x4x32xbf16, #tpu.memory_space<vmem>>, vector<1x4x32xbf16>
    %85 = vector.shape_cast %84 : vector<1x4x32xbf16> to vector<4x32xbf16>
    %86 = arith.extf %85 : vector<4x32xbf16> to vector<4x32xf32>
    %cst_39 = arith.constant dense<0.000000e+00> : vector<4xf32>
    %87 = vector.multi_reduction <add>, %83, %cst_39 [1] : vector<4x16xf32> to vector<4xf32>
    %88 = vector.shape_cast %87 : vector<4xf32> to vector<4x1xf32>
    %89 = vector.broadcast %88 : vector<4x1xf32> to vector<4x32xf32>
    %90 = arith.mulf %86, %89 : vector<4x32xf32>
    %cst_40 = arith.constant dense<0.000000e+00> : vector<32xf32>
    %91 = vector.multi_reduction <add>, %90, %cst_40 [0] : vector<4x32xf32> to vector<32xf32>
    %92 = vector.shape_cast %91 : vector<32xf32> to vector<1x32xf32>
    %93 = vector.broadcast %92 : vector<1x32xf32> to vector<4x32xf32>
    %94 = arith.mulf %86, %93 : vector<4x32xf32>
    %cst_41 = arith.constant dense<0.000000e+00> : vector<4xf32>
    %95 = vector.multi_reduction <add>, %94, %cst_41 [1] : vector<4x32xf32> to vector<4xf32>
    %96 = vector.shape_cast %95 : vector<4xf32> to vector<4x1xf32>
    %97 = vector.broadcast %96 : vector<4x1xf32> to vector<4x16xf32>
    %98 = arith.mulf %83, %97 : vector<4x16xf32>
    %cst_42 = arith.constant dense<0.000000e+00> : vector<16xf32>
    %99 = vector.multi_reduction <add>, %98, %cst_42 [0] : vector<4x16xf32> to vector<16xf32>
    %100 = vector.shape_cast %99 : vector<16xf32> to vector<1x16xf32>
    %101 = arith.mulf %100, %100 : vector<1x16xf32>
    %cst_43 = arith.constant dense<0.000000e+00> : vector<1xf32>
    %102 = vector.multi_reduction <add>, %101, %cst_43 [1] : vector<1x16xf32> to vector<1xf32>
    %103 = vector.shape_cast %102 : vector<1xf32> to vector<1x1xf32>
    %104 = math.sqrt %103 : vector<1x1xf32>
    %105 = math.sqrt %104 : vector<1x1xf32>
    %106 = arith.subf %80, %105 : vector<1x1xf32>
    %107 = arith.mulf %106, %106 : vector<1x1xf32>
    %cst_44 = arith.constant 1.562500e-02 : f32
    %108 = vector.broadcast %cst_44 : f32 to vector<1x1xf32>
    %109 = arith.mulf %107, %108 : vector<1x1xf32>
    %110 = arith.addf %55, %109 : vector<1x1xf32>
    %111 = vector.shape_cast %110 : vector<1x1xf32> to vector<1x1x1xf32>
    %c0_45 = arith.constant 0 : index
    %c0_46 = arith.constant 0 : index
    %c0_47 = arith.constant 0 : index
    %112 = vector.load %arg9[%c0_45, %c0_46, %c0_47] : memref<1x1x1xf32, #tpu.memory_space<vmem>>, vector<1x1x1xf32>
    tpu.vector_store %arg9[%c0_45, %c0_46, %c0_47], %111 {strides = array<i32>} : memref<1x1x1xf32, #tpu.memory_space<vmem>>, vector<1x1x1xf32>,
    return
  }
  func.func @transform_0(%arg0: i32) -> (i32, i32, i32) {
    %c0_i32 = arith.constant 0 : i32
    %c0_i32_0 = arith.constant 0 : i32
    %c0_i32_1 = arith.constant 0 : i32
    return %arg0, %c0_i32, %c0_i32_0 : i32, i32, i32
  }
  func.func @transform_1(%arg0: i32) -> (i32, i32, i32) {
    %c0_i32 = arith.constant 0 : i32
    %c0_i32_0 = arith.constant 0 : i32
    %c0_i32_1 = arith.constant 0 : i32
    return %arg0, %c0_i32, %c0_i32_0 : i32, i32, i32
  }
  func.func @transform_2(%arg0: i32) -> (i32, i32, i32) {
    %c0_i32 = arith.constant 0 : i32
    %c0_i32_0 = arith.constant 0 : i32
    %c0_i32_1 = arith.constant 0 : i32
    return %arg0, %c0_i32, %c0_i32_0 : i32, i32, i32
  }
  func.func @transform_3(%arg0: i32) -> (i32, i32, i32) {
    %c0_i32 = arith.constant 0 : i32
    %c0_i32_0 = arith.constant 0 : i32
    %c0_i32_1 = arith.constant 0 : i32
    return %arg0, %c0_i32, %c0_i32_0 : i32, i32, i32
  }
  func.func @transform_4(%arg0: i32) -> (i32, i32, i32) {
    %c0_i32 = arith.constant 0 : i32
    %c0_i32_0 = arith.constant 0 : i32
    %c0_i32_1 = arith.constant 0 : i32
    return %arg0, %c0_i32, %c0_i32_0 : i32, i32, i32
  }
  func.func @transform_5(%arg0: i32) -> (i32, i32, i32) {
    %c0_i32 = arith.constant 0 : i32
    %c0_i32_0 = arith.constant 0 : i32
    %c0_i32_1 = arith.constant 0 : i32
    return %arg0, %c0_i32, %c0_i32_0 : i32, i32, i32
  }
  func.func @transform_6(%arg0: i32) -> (i32, i32, i32) {
    %c0_i32 = arith.constant 0 : i32
    %c0_i32_0 = arith.constant 0 : i32
    %c0_i32_1 = arith.constant 0 : i32
    return %arg0, %c0_i32, %c0_i32_0 : i32, i32, i32
  }
  func.func @transform_7(%arg0: i32) -> (i32, i32, i32) {
    %c0_i32 = arith.constant 0 : i32
    %c0_i32_0 = arith.constant 0 : i32
    %c0_i32_1 = arith.constant 0 : i32
    return %arg0, %c0_i32, %c0_i32_0 : i32, i32, i32
  }
  func.func @transform_8(%arg0: i32) -> (i32, i32, i32) {
    %c0_i32 = arith.constant 0 : i32
    %c0_i32_0 = arith.constant 0 : i32
    %c0_i32_1 = arith.constant 0 : i32
    return %arg0, %c0_i32, %c0_i32_0 : i32, i32, i32
  }
}

</mosaic_0001>

<llo_original>
// kernel: _lambda_.1
$region0: #{_lambda_.1}
  #allocation0 [shape = 'u32[]', space=smem, size = 0x4, offset = 0x4, fixed_abs, tag = 'smem constant byte address 0x4 - core index']
  #allocation1 [shape = 'u32[144,128]{1,0:T(1,128)}', space=vmem, size = 0x12000, scoped, tag = 'internal scratch']
  %s0 = inlined_call_operand.vmem [shape: bf16[2,16,8], index: 0, kind: input, shape index: {}]
  %s1 = inlined_call_operand.vmem [shape: bf16[2,16,16], index: 1, kind: input, shape index: {}]
  %s2 = inlined_call_operand.vmem [shape: bf16[2,16,8], index: 2, kind: input, shape index: {}]
  %s3 = inlined_call_operand.vmem [shape: bf16[2,16,16], index: 3, kind: input, shape index: {}]
  %s4 = inlined_call_operand.vmem [shape: bf16[2,4,16], index: 4, kind: input, shape index: {}]
  %s5 = inlined_call_operand.vmem [shape: bf16[2,4,32], index: 5, kind: input, shape index: {}]
  %s6 = inlined_call_operand.vmem [shape: bf16[2,4,16], index: 6, kind: input, shape index: {}]
  %s7 = inlined_call_operand.vmem [shape: bf16[2,4,32], index: 7, kind: input, shape index: {}]
  %s8 = inlined_call_operand.vmem [shape: f32[2,1,1], index: 8, kind: output, shape index: {}]
  %s9 = sld [smem:[#allocation0]]
  $region65: #{_lambda_.1} parent=0
    _
  %s11 = ssub.s32 1, %s9
  %s12 = scalar_select 0, %s11, %s9
  loop: start=0, step=1, limit=4
  $region2: #{_lambda_.1} parent=0 // loop_pre_header
    _
  $region3: #{_lambda_.1} parent=0 // loop_header
    %s14 = sphi 0, %s18
    %p15 = scmp.ge.s32.totalorder %s14, 4
    %s24 = sphi 0, %s26
    %s27 = sphi 0, %s24
    %s28 = sphi 0, %s27
    %s44 = sphi 0, %s28
    %s50 = sphi 0, %s52
    %s53 = sphi 0, %s50
    %s54 = sphi 0, %s53
    %s70 = sphi 0, %s54
    %s76 = sphi 0, %s78
    %s79 = sphi 0, %s76
    %s80 = sphi 0, %s79
    %s96 = sphi 0, %s80
    %s102 = sphi 0, %s104
    %s105 = sphi 0, %s102
    %s106 = sphi 0, %s105
    %s122 = sphi 0, %s106
    %s128 = sphi 0, %s130
    %s131 = sphi 0, %s128
    %s132 = sphi 0, %s131
    %s148 = sphi 0, %s132
    %s154 = sphi 0, %s156
    %s157 = sphi 0, %s154
    %s158 = sphi 0, %s157
    %s174 = sphi 0, %s158
    %s180 = sphi 0, %s182
    %s183 = sphi 0, %s180
    %s184 = sphi 0, %s183
    %s200 = sphi 0, %s184
    %s206 = sphi 0, %s208
    %s209 = sphi 0, %s206
    %s210 = sphi 0, %s209
    %s226 = sphi 0, %s210
    %s232 = sphi 0, %s234
    %s235 = sphi 0, %s232
    %s236 = sphi 0, %s235
    %s252 = sphi 0, %s236
  $region4: #{_lambda_.1} parent=0 // loop_header_branch
    %17 = sbr.rel (%p15) target = $region8
  $region5: #{_lambda_.1} parent=0 // loop_body
    %s19 = ssub.s32 %s14, 1
    %s20 = ssub.s32 %s14, 2
    %s21 = sadd.s32 %s14, 1
    %s22 = ssub.s32 %s14, %s21
    %p23 = scmp.eq.s32.totalorder %s22, 0
    %s25 = sadd.s32 %s24, 1
    %s26 = scalar_select %p23, %s24, %s25
    %p29 = pneg %p23
    %p30 = scmp.eq.s32.totalorder %s14, 1
    %p31 = por %p29, %p30
    %p32 = scmp.ne.s32.totalorder %s24, %s27
    %p33 = scmp.eq.s32.totalorder %s14, 0
    %p34 = por %p32, %p33
    %p35 = scmp.ne.s32.totalorder %s24, %s27
    %p36 = scmp.eq.s32.totalorder %s19, 1
    %p37 = por %p35, %p36
    %p38 = scmp.ne.s32.totalorder %s27, %s28
    %p39 = scmp.eq.s32.totalorder %s19, 0
    %p40 = por %p38, %p39
    %p41 = scmp.ne.s32.totalorder %s27, %s28
    %p42 = scmp.eq.s32.totalorder %s20, 1
    %p43 = por %p41, %p42
    %p45 = scmp.ne.s32.totalorder %s28, %s44
    %p46 = scmp.eq.s32.totalorder %s20, 0
    %p47 = por %p45, %p46
    %s48 = ssub.s32 %s14, %s21
    %p49 = scmp.eq.s32.totalorder %s48, 0
    %s51 = sadd.s32 %s50, 1
    %s52 = scalar_select %p49, %s50, %s51
    %p55 = pneg %p49
    %p56 = scmp.eq.s32.totalorder %s14, 1
    %p57 = por %p55, %p56
    %p58 = scmp.ne.s32.totalorder %s50, %s53
    %p59 = scmp.eq.s32.totalorder %s14, 0
    %p60 = por %p58, %p59
    %p61 = scmp.ne.s32.totalorder %s50, %s53
    %p62 = scmp.eq.s32.totalorder %s19, 1
    %p63 = por %p61, %p62
    %p64 = scmp.ne.s32.totalorder %s53, %s54
    %p65 = scmp.eq.s32.totalorder %s19, 0
    %p66 = por %p64, %p65
    %p67 = scmp.ne.s32.totalorder %s53, %s54
    %p68 = scmp.eq.s32.totalorder %s20, 1
    %p69 = por %p67, %p68
    %p71 = scmp.ne.s32.totalorder %s54, %s70
    %p72 = scmp.eq.s32.totalorder %s20, 0
    %p73 = por %p71, %p72
    %s74 = ssub.s32 %s14, %s21
    %p75 = scmp.eq.s32.totalorder %s74, 0
    %s77 = sadd.s32 %s76, 1
    %s78 = scalar_select %p75, %s76, %s77
    %p81 = pneg %p75
    %p82 = scmp.eq.s32.totalorder %s14, 1
    %p83 = por %p81, %p82
    %p84 = scmp.ne.s32.totalorder %s76, %s79
    %p85 = scmp.eq.s32.totalorder %s14, 0
    %p86 = por %p84, %p85
    %p87 = scmp.ne.s32.totalorder %s76, %s79
    %p88 = scmp.eq.s32.totalorder %s19, 1
    %p89 = por %p87, %p88
    %p90 = scmp.ne.s32.totalorder %s79, %s80
    %p91 = scmp.eq.s32.totalorder %s19, 0
    %p92 = por %p90, %p91
    %p93 = scmp.ne.s32.totalorder %s79, %s80
    %p94 = scmp.eq.s32.totalorder %s20, 1
    %p95 = por %p93, %p94
    %p97 = scmp.ne.s32.totalorder %s80, %s96
    %p98 = scmp.eq.s32.totalorder %s20, 0
    %p99 = por %p97, %p98
    %s100 = ssub.s32 %s14, %s21
    %p101 = scmp.eq.s32.totalorder %s100, 0
    %s103 = sadd.s32 %s102, 1
    %s104 = scalar_select %p101, %s102, %s103
    %p107 = pneg %p101
    %p108 = scmp.eq.s32.totalorder %s14, 1
    %p109 = por %p107, %p108
    %p110 = scmp.ne.s32.totalorder %s102, %s105
    %p111 = scmp.eq.s32.totalorder %s14, 0
    %p112 = por %p110, %p111
    %p113 = scmp.ne.s32.totalorder %s102, %s105
    %p114 = scmp.eq.s32.totalorder %s19, 1
    %p115 = por %p113, %p114
    %p116 = scmp.ne.s32.totalorder %s105, %s106
    %p117 = scmp.eq.s32.totalorder %s19, 0
    %p118 = por %p116, %p117
    %p119 = scmp.ne.s32.totalorder %s105, %s106
    %p120 = scmp.eq.s32.totalorder %s20, 1
    %p121 = por %p119, %p120
    %p123 = scmp.ne.s32.totalorder %s106, %s122
    %p124 = scmp.eq.s32.totalorder %s20, 0
    %p125 = por %p123, %p124
    %s126 = ssub.s32 %s14, %s21
    %p127 = scmp.eq.s32.totalorder %s126, 0
    %s129 = sadd.s32 %s128, 1
    %s130 = scalar_select %p127, %s128, %s129
    %p133 = pneg %p127
    %p134 = scmp.eq.s32.totalorder %s14, 1
    %p135 = por %p133, %p134
    %p136 = scmp.ne.s32.totalorder %s128, %s131
    %p137 = scmp.eq.s32.totalorder %s14, 0
    %p138 = por %p136, %p137
    %p139 = scmp.ne.s32.totalorder %s128, %s131
    %p140 = scmp.eq.s32.totalorder %s19, 1
    %p141 = por %p139, %p140
    %p142 = scmp.ne.s32.totalorder %s131, %s132
    %p143 = scmp.eq.s32.totalorder %s19, 0
    %p144 = por %p142, %p143
    %p145 = scmp.ne.s32.totalorder %s131, %s132
    %p146 = scmp.eq.s32.totalorder %s20, 1
    %p147 = por %p145, %p146
    %p149 = scmp.ne.s32.totalorder %s132, %s148
    %p150 = scmp.eq.s32.totalorder %s20, 0
    %p151 = por %p149, %p150
    %s152 = ssub.s32 %s14, %s21
    %p153 = scmp.eq.s32.totalorder %s152, 0
    %s155 = sadd.s32 %s154, 1
    %s156 = scalar_select %p153, %s154, %s155
    %p159 = pneg %p153
    %p160 = scmp.eq.s32.totalorder %s14, 1
    %p161 = por %p159, %p160
    %p162 = scmp.ne.s32.totalorder %s154, %s157
    %p163 = scmp.eq.s32.totalorder %s14, 0
    %p164 = por %p162, %p163
    %p165 = scmp.ne.s32.totalorder %s154, %s157
    %p166 = scmp.eq.s32.totalorder %s19, 1
    %p167 = por %p165, %p166
    %p168 = scmp.ne.s32.totalorder %s157, %s158
    %p169 = scmp.eq.s32.totalorder %s19, 0
    %p170 = por %p168, %p169
    %p171 = scmp.ne.s32.totalorder %s157, %s158
    %p172 = scmp.eq.s32.totalorder %s20, 1
    %p173 = por %p171, %p172
    %p175 = scmp.ne.s32.totalorder %s158, %s174
    %p176 = scmp.eq.s32.totalorder %s20, 0
    %p177 = por %p175, %p176
    %s178 = ssub.s32 %s14, %s21
    %p179 = scmp.eq.s32.totalorder %s178, 0
    %s181 = sadd.s32 %s180, 1
    %s182 = scalar_select %p179, %s180, %s181
    %p185 = pneg %p179
    %p186 = scmp.eq.s32.totalorder %s14, 1
    %p187 = por %p185, %p186
    %p188 = scmp.ne.s32.totalorder %s180, %s183
    %p189 = scmp.eq.s32.totalorder %s14, 0
    %p190 = por %p188, %p189
    %p191 = scmp.ne.s32.totalorder %s180, %s183
    %p192 = scmp.eq.s32.totalorder %s19, 1
    %p193 = por %p191, %p192
    %p194 = scmp.ne.s32.totalorder %s183, %s184
    %p195 = scmp.eq.s32.totalorder %s19, 0
    %p196 = por %p194, %p195
    %p197 = scmp.ne.s32.totalorder %s183, %s184
    %p198 = scmp.eq.s32.totalorder %s20, 1
    %p199 = por %p197, %p198
    %p201 = scmp.ne.s32.totalorder %s184, %s200
    %p202 = scmp.eq.s32.totalorder %s20, 0
    %p203 = por %p201, %p202
    %s204 = ssub.s32 %s14, %s21
    %p205 = scmp.eq.s32.totalorder %s204, 0
    %s207 = sadd.s32 %s206, 1
    %s208 = scalar_select %p205, %s206, %s207
    %p211 = pneg %p205
    %p212 = scmp.eq.s32.totalorder %s14, 1
    %p213 = por %p211, %p212
    %p214 = scmp.ne.s32.totalorder %s206, %s209
    %p215 = scmp.eq.s32.totalorder %s14, 0
    %p216 = por %p214, %p215
    %p217 = scmp.ne.s32.totalorder %s206, %s209
    %p218 = scmp.eq.s32.totalorder %s19, 1
    %p219 = por %p217, %p218
    %p220 = scmp.ne.s32.totalorder %s209, %s210
    %p221 = scmp.eq.s32.totalorder %s19, 0
    %p222 = por %p220, %p221
    %p223 = scmp.ne.s32.totalorder %s209, %s210
    %p224 = scmp.eq.s32.totalorder %s20, 1
    %p225 = por %p223, %p224
    %p227 = scmp.ne.s32.totalorder %s210, %s226
    %p228 = scmp.eq.s32.totalorder %s20, 0
    %p229 = por %p227, %p228
    %s230 = ssub.s32 %s14, %s21
    %p231 = scmp.eq.s32.totalorder %s230, 0
    %s233 = sadd.s32 %s232, 1
    %s234 = scalar_select %p231, %s232, %s233
    %p237 = pneg %p231
    %p238 = scmp.eq.s32.totalorder %s14, 1
    %p239 = por %p237, %p238
    %p240 = scmp.ne.s32.totalorder %s232, %s235
    %p241 = scmp.eq.s32.totalorder %s14, 0
    %p242 = por %p240, %p241
    %p243 = scmp.ne.s32.totalorder %s232, %s235
    %p244 = scmp.eq.s32.totalorder %s19, 1
    %p245 = por %p243, %p244
    %p246 = scmp.ne.s32.totalorder %s235, %s236
    %p247 = scmp.eq.s32.totalorder %s19, 0
    %p248 = por %p246, %p247
    %p249 = scmp.ne.s32.totalorder %s235, %s236
    %p250 = scmp.eq.s32.totalorder %s20, 1
    %p251 = por %p249, %p250
    %p253 = scmp.ne.s32.totalorder %s236, %s252
    %p254 = scmp.eq.s32.totalorder %s20, 0
    %p255 = por %p253, %p254
    %p256 = scmp.le.s32.totalorder 1, %s14
    %p257 = scmp.lt.s32.totalorder %s14, 3
    %p258 = pnand %p256, %p257
    %p259 = pneg %p258
    // Predicated region
    $region9: #{_lambda_.1} parent=5 // pred_check
      _
    $region10: #{_lambda_.1} parent=5 // pred_check_branch
      %261 = sbr.rel (%p258) target = $region12
    $region11: #{_lambda_.1} parent=5 // pred_region
      %s262 = ssub.s32 %s14, 1
    $region12: #{_lambda_.1} parent=5 // pred_fallthru
      _
    %p263 = scmp.lt.s32.totalorder %s14, 2
    // Predicated region
    $region13: #{_lambda_.1} parent=5 // pred_check
      %p264 = pneg %p263
    $region14: #{_lambda_.1} parent=5 // pred_check_branch
      %266 = sbr.rel (%p264) target = $region16
    $region15: #{_lambda_.1} parent=5 // pred_region
      // Predicated region
      $region17: #{_lambda_.1} parent=15 // pred_check
        %p267 = pneg %p34
      $region18: #{_lambda_.1} parent=15 // pred_check_branch
        %269 = sbr.rel (%p267) target = $region20
      $region19: #{_lambda_.1} parent=15 // pred_region
        %p270 = scmp.lt.s32.totalorder %s14, 1
        %s271 = scalar_select %p270, %s14, 1
        %s272 = smul.addr %s271, 2
        %s273 = smul.addr %s272, 4
        %s274 = scalar_lea.vmem %s0, %s273
      $region20: #{_lambda_.1} parent=15 // pred_fallthru
        _
      // Predicated region
      $region21: #{_lambda_.1} parent=15 // pred_check
        %p275 = pneg %p60
      $region22: #{_lambda_.1} parent=15 // pred_check_branch
        %277 = sbr.rel (%p275) target = $region24
      $region23: #{_lambda_.1} parent=15 // pred_region
        %p278 = scmp.lt.s32.totalorder %s14, 1
        %s279 = scalar_select %p278, %s14, 1
        %s280 = smul.addr %s279, 2
        %s281 = smul.addr %s280, 4
        %s282 = scalar_lea.vmem %s1, %s281
      $region24: #{_lambda_.1} parent=15 // pred_fallthru
        _
      // Predicated region
      $region25: #{_lambda_.1} parent=15 // pred_check
        %p283 = pneg %p86
      $region26: #{_lambda_.1} parent=15 // pred_check_branch
        %285 = sbr.rel (%p283) target = $region28
      $region27: #{_lambda_.1} parent=15 // pred_region
        %p286 = scmp.lt.s32.totalorder %s14, 1
        %s287 = scalar_select %p286, %s14, 1
        %s288 = smul.addr %s287, 2
        %s289 = smul.addr %s288, 4
        %s290 = scalar_lea.vmem %s2, %s289
      $region28: #{_lambda_.1} parent=15 // pred_fallthru
        _
      // Predicated region
      $region29: #{_lambda_.1} parent=15 // pred_check
        %p291 = pneg %p112
      $region30: #{_lambda_.1} parent=15 // pred_check_branch
        %293 = sbr.rel (%p291) target = $region32
      $region31: #{_lambda_.1} parent=15 // pred_region
        %p294 = scmp.lt.s32.totalorder %s14, 1
        %s295 = scalar_select %p294, %s14, 1
        %s296 = smul.addr %s295, 2
        %s297 = smul.addr %s296, 4
        %s298 = scalar_lea.vmem %s3, %s297
      $region32: #{_lambda_.1} parent=15 // pred_fallthru
        _
      // Predicated region
      $region33: #{_lambda_.1} parent=15 // pred_check
        %p299 = pneg %p138
      $region34: #{_lambda_.1} parent=15 // pred_check_branch
        %301 = sbr.rel (%p299) target = $region36
      $region35: #{_lambda_.1} parent=15 // pred_region
        %p302 = scmp.lt.s32.totalorder %s14, 1
        %s303 = scalar_select %p302, %s14, 1
        %s304 = smul.addr %s303, 2
        %s305 = scalar_lea.vmem %s4, %s304
      $region36: #{_lambda_.1} parent=15 // pred_fallthru
        _
      // Predicated region
      $region37: #{_lambda_.1} parent=15 // pred_check
        %p306 = pneg %p164
      $region38: #{_lambda_.1} parent=15 // pred_check_branch
        %308 = sbr.rel (%p306) target = $region40
      $region39: #{_lambda_.1} parent=15 // pred_region
        %p309 = scmp.lt.s32.totalorder %s14, 1
        %s310 = scalar_select %p309, %s14, 1
        %s311 = smul.addr %s310, 2
        %s312 = scalar_lea.vmem %s5, %s311
      $region40: #{_lambda_.1} parent=15 // pred_fallthru
        _
      // Predicated region
      $region41: #{_lambda_.1} parent=15 // pred_check
        %p313 = pneg %p190
      $region42: #{_lambda_.1} parent=15 // pred_check_branch
        %315 = sbr.rel (%p313) target = $region44
      $region43: #{_lambda_.1} parent=15 // pred_region
        %p316 = scmp.lt.s32.totalorder %s14, 1
        %s317 = scalar_select %p316, %s14, 1
        %s318 = smul.addr %s317, 2
        %s319 = scalar_lea.vmem %s6, %s318
      $region44: #{_lambda_.1} parent=15 // pred_fallthru
        _
      // Predicated region
      $region45: #{_lambda_.1} parent=15 // pred_check
        %p320 = pneg %p216
      $region46: #{_lambda_.1} parent=15 // pred_check_branch
        %322 = sbr.rel (%p320) target = $region48
      $region47: #{_lambda_.1} parent=15 // pred_region
        %p323 = scmp.lt.s32.totalorder %s14, 1
        %s324 = scalar_select %p323, %s14, 1
        %s325 = smul.addr %s324, 2
        %s326 = scalar_lea.vmem %s7, %s325
      $region48: #{_lambda_.1} parent=15 // pred_fallthru
        _
    $region16: #{_lambda_.1} parent=5 // pred_fallthru
      _
    %p327 = scmp.le.s32.totalorder 1, %s14
    %p328 = scmp.lt.s32.totalorder %s14, 3
    %p329 = pnand %p327, %p328
    %p330 = pneg %p329
    // Predicated region
    $region49: #{_lambda_.1} parent=5 // pred_check
      _
    $region50: #{_lambda_.1} parent=5 // pred_check_branch
      %332 = sbr.rel (%p329) target = $region52
    $region51: #{_lambda_.1} parent=5 // pred_region
      %s333 = ssub.s32 %s14, 1
      %p334 = scmp.lt.s32.totalorder %s19, 1
      %s335 = scalar_select %p334, %s19, 1
      %s336 = smul.addr %s335, 2
      %s337 = smul.addr %s336, 4
      %s338 = scalar_lea.vmem %s0, %s337
      %p339 = pneg %p40
      %p340 = pneg %p37
      %p341 = scmp.lt.s32.totalorder %s19, 1
      %s342 = scalar_select %p341, %s19, 1
      %s343 = smul.addr %s342, 2
      %s344 = smul.addr %s343, 4
      %s345 = scalar_lea.vmem %s1, %s344
      %p346 = pneg %p66
      %p347 = pneg %p63
      %p348 = scmp.lt.s32.totalorder %s19, 1
      %s349 = scalar_select %p348, %s19, 1
      %s350 = smul.addr %s349, 2
      %s351 = smul.addr %s350, 4
      %s352 = scalar_lea.vmem %s2, %s351
      %p353 = pneg %p92
      %p354 = pneg %p89
      %p355 = scmp.lt.s32.totalorder %s19, 1
      %s356 = scalar_select %p355, %s19, 1
      %s357 = smul.addr %s356, 2
      %s358 = smul.addr %s357, 4
      %s359 = scalar_lea.vmem %s3, %s358
      %p360 = pneg %p118
      %p361 = pneg %p115
      %p362 = scmp.lt.s32.totalorder %s19, 1
      %s363 = scalar_select %p362, %s19, 1
      %s364 = smul.addr %s363, 2
      %s365 = scalar_lea.vmem %s4, %s364
      %p366 = pneg %p144
      %p367 = pneg %p141
      %p368 = scmp.lt.s32.totalorder %s19, 1
      %s369 = scalar_select %p368, %s19, 1
      %s370 = smul.addr %s369, 2
      %s371 = scalar_lea.vmem %s5, %s370
      %p372 = pneg %p170
      %p373 = pneg %p167
      %p374 = scmp.lt.s32.totalorder %s19, 1
      %s375 = scalar_select %p374, %s19, 1
      %s376 = smul.addr %s375, 2
      %s377 = scalar_lea.vmem %s6, %s376
      %p378 = pneg %p196
      %p379 = pneg %p193
      %p380 = scmp.lt.s32.totalorder %s19, 1
      %s381 = scalar_select %p380, %s19, 1
      %s382 = smul.addr %s381, 2
      %s383 = scalar_lea.vmem %s7, %s382
      %p384 = pneg %p222
      %p385 = pneg %p219
      %p386 = pneg %p248
      %p387 = pneg %p245
      %p388 = scmp.lt.s32.totalorder %s19, 1
      %s389 = scalar_select %p388, %s19, 1
      %s390 = scalar_lea.vmem %s8, %s389
      %p391 = scmp.lt.s32.totalorder %s19, 1
      %s392 = scalar_select %p391, %s19, 1
      %s393 = smul.addr %s392, 2
      %s394 = smul.addr %s393, 4
      %s395 = scalar_lea.vmem %s0, %s394
      %p396 = scmp.lt.s32.totalorder %s19, 1
      %s397 = scalar_select %p396, %s19, 1
      %s398 = smul.addr %s397, 2
      %s399 = smul.addr %s398, 4
      %s400 = scalar_lea.vmem %s1, %s399
      %p401 = scmp.lt.s32.totalorder %s19, 1
      %s402 = scalar_select %p401, %s19, 1
      %s403 = smul.addr %s402, 2
      %s404 = smul.addr %s403, 4
      %s405 = scalar_lea.vmem %s2, %s404
      %p406 = scmp.lt.s32.totalorder %s19, 1
      %s407 = scalar_select %p406, %s19, 1
      %s408 = smul.addr %s407, 2
      %s409 = smul.addr %s408, 4
      %s410 = scalar_lea.vmem %s3, %s409
      %p411 = scmp.lt.s32.totalorder %s19, 1
      %s412 = scalar_select %p411, %s19, 1
      %s413 = smul.addr %s412, 2
      %s414 = scalar_lea.vmem %s4, %s413
      %p415 = scmp.lt.s32.totalorder %s19, 1
      %s416 = scalar_select %p415, %s19, 1
      %s417 = smul.addr %s416, 2
      %s418 = scalar_lea.vmem %s5, %s417
      %p419 = scmp.lt.s32.totalorder %s19, 1
      %s420 = scalar_select %p419, %s19, 1
      %s421 = smul.addr %s420, 2
      %s422 = scalar_lea.vmem %s6, %s421
      %p423 = scmp.lt.s32.totalorder %s19, 1
      %s424 = scalar_select %p423, %s19, 1
      %s425 = smul.addr %s424, 2
      %s426 = scalar_lea.vmem %s7, %s425
      %p427 = scmp.lt.s32.totalorder %s19, 1
      %s428 = scalar_select %p427, %s19, 1
      %s429 = scalar_lea.vmem %s8, %s428
      %v430 = vld [vmem:[%s395] sm:$0xf]
      %v431 = vld [vmem:[%s395 + $0x4] sm:$0xf]
      %v432 = vunpack.c.l.bf16 %v430
      %v433 = vunpack.c.l.bf16 %v431
      %v434 = vld [vmem:[%s400] sm:$0xf]
      %v435 = vld [vmem:[%s400 + $0x4] sm:$0xf]
      %v436 = vunpack.c.l.bf16 %v434
      %v437 = vunpack.c.l.bf16 %v435
      %vm438 = vcmask 64512
      %v439 = vsel %vm438, %v432, 0.0
      %440 = vadd.xlane.f32.xlu0 %v439
      %v441 = vpop.xlane.xlu0 %440
      %v442 = vsel %vm438, %v433, 0.0
      %443 = vadd.xlane.f32.xlu0 %v442
      %v444 = vpop.xlane.xlu0 %443
      %v445 = vmul.f32 %v436, %v441
      %v446 = vmul.f32 %v437, %v444
      %vm447 = vcmask 130048
      %v448 = vsel %vm447, %v445, 0.0
      %v449 = vsel %vm447, %v446, 0.0
      %v450 = vadd.f32 %v448, %v449
      %v451 = vrot.slane %v450, 4
      %v452 = vadd.f32 %v450, %v451
      %v453 = vrot.slane %v452, 2
      %v454 = vadd.f32 %v452, %v453
      %v455 = vrot.slane %v454, 1
      %v456 = vadd.f32 %v454, %v455
      %v457 = vmul.f32 %v436, %v456
      %v458 = vmul.f32 %v437, %v456
      %v459 = vsel %vm447, %v457, 0.0
      %460 = vadd.xlane.f32.xlu0 %v459
      %v461 = vpop.xlane.xlu0 %460
      %v462 = vsel %vm447, %v458, 0.0
      %463 = vadd.xlane.f32.xlu0 %v462
      %v464 = vpop.xlane.xlu0 %463
      %v465 = vmul.f32 %v432, %v461
      %v466 = vmul.f32 %v433, %v464
      %v467 = vsel %vm438, %v465, 0.0
      %v468 = vsel %vm438, %v466, 0.0
      %v469 = vadd.f32 %v467, %v468
      %v470 = vrot.slane %v469, 4
      %v471 = vadd.f32 %v469, %v470
      %v472 = vrot.slane %v471, 2
      %v473 = vadd.f32 %v471, %v472
      %v474 = vrot.slane %v473, 1
      %v475 = vadd.f32 %v473, %v474
      %v476 = vmul.f32 %v475, %v475
      %v477 = vsel %vm438, %v476, 0.0
      %478 = vadd.xlane.f32.xlu0 %v477
      %v479 = vpop.xlane.xlu0 %478
      %v480 = vrsqrt.pop %v479
      %v481 = vmul.f32 %v479, %v480
      %vm482 = vcmp.eq.f32.partialorder %v479, inf
      %v483 = vsel %vm482, %v479, %v481
      %vm484 = vcmp.eq.f32.partialorder %v479, 0.0
      %v485 = vand.u32 %v479, 2147483648
      %v486 = vsel %vm484, %v485, %v483
      %v487 = vrsqrt.pop %v486
      %v488 = vmul.f32 %v486, %v487
      %vm489 = vcmp.eq.f32.partialorder %v486, inf
      %v490 = vsel %vm489, %v486, %v488
      %vm491 = vcmp.eq.f32.partialorder %v486, 0.0
      %v492 = vand.u32 %v486, 2147483648
      %v493 = vsel %vm491, %v492, %v490
      %v494 = vld [vmem:[%s405] sm:$0xf]
      %v495 = vld [vmem:[%s405 + $0x4] sm:$0xf]
      %v496 = vunpack.c.l.bf16 %v494
      %v497 = vunpack.c.l.bf16 %v495
      %v498 = vld [vmem:[%s410] sm:$0xf]
      %v499 = vld [vmem:[%s410 + $0x4] sm:$0xf]
      %v500 = vunpack.c.l.bf16 %v498
      %v501 = vunpack.c.l.bf16 %v499
      %v502 = vsel %vm438, %v496, 0.0
      %503 = vadd.xlane.f32.xlu0 %v502
      %v504 = vpop.xlane.xlu0 %503
      %v505 = vsel %vm438, %v497, 0.0
      %506 = vadd.xlane.f32.xlu0 %v505
      %v507 = vpop.xlane.xlu0 %506
      %v508 = vmul.f32 %v500, %v504
      %v509 = vmul.f32 %v501, %v507
      %v510 = vsel %vm447, %v508, 0.0
      %v511 = vsel %vm447, %v509, 0.0
      %v512 = vadd.f32 %v510, %v511
      %v513 = vrot.slane %v512, 4
      %v514 = vadd.f32 %v512, %v513
      %v515 = vrot.slane %v514, 2
      %v516 = vadd.f32 %v514, %v515
      %v517 = vrot.slane %v516, 1
      %v518 = vadd.f32 %v516, %v517
      %v519 = vmul.f32 %v500, %v518
      %v520 = vmul.f32 %v501, %v518
      %v521 = vsel %vm447, %v519, 0.0
      %522 = vadd.xlane.f32.xlu0 %v521
      %v523 = vpop.xlane.xlu0 %522
      %v524 = vsel %vm447, %v520, 0.0
      %525 = vadd.xlane.f32.xlu0 %v524
      %v526 = vpop.xlane.xlu0 %525
      %v527 = vmul.f32 %v496, %v523
      %v528 = vmul.f32 %v497, %v526
      %v529 = vsel %vm438, %v527, 0.0
      %v530 = vsel %vm438, %v528, 0.0
      %v531 = vadd.f32 %v529, %v530
      %v532 = vrot.slane %v531, 4
      %v533 = vadd.f32 %v531, %v532
      %v534 = vrot.slane %v533, 2
      %v535 = vadd.f32 %v533, %v534
      %v536 = vrot.slane %v535, 1
      %v537 = vadd.f32 %v535, %v536
      %v538 = vmul.f32 %v537, %v537
      %v539 = vsel %vm438, %v538, 0.0
      %540 = vadd.xlane.f32.xlu0 %v539
      %v541 = vpop.xlane.xlu0 %540
      %v542 = vrsqrt.pop %v541
      %v543 = vmul.f32 %v541, %v542
      %vm544 = vcmp.eq.f32.partialorder %v541, inf
      %v545 = vsel %vm544, %v541, %v543
      %vm546 = vcmp.eq.f32.partialorder %v541, 0.0
      %v547 = vand.u32 %v541, 2147483648
      %v548 = vsel %vm546, %v547, %v545
      %v549 = vrsqrt.pop %v548
      %v550 = vmul.f32 %v548, %v549
      %vm551 = vcmp.eq.f32.partialorder %v548, inf
      %v552 = vsel %vm551, %v548, %v550
      %vm553 = vcmp.eq.f32.partialorder %v548, 0.0
      %v554 = vand.u32 %v548, 2147483648
      %v555 = vsel %vm553, %v554, %v552
      %v556 = vsub.f32 %v493, %v555
      %v557 = vmul.f32 %v556, %v556
      %v558 = vmul.f32 %v557, 0.00048828125
      %v559 = vadd.f32 %v558, 0.0
      %v560 = vld [vmem:[%s414] sm:$0x3]
      %v561 = vunpack.c.l.bf16 %v560
      %v562 = vld [vmem:[%s418] sm:$0x3]
      %v563 = vunpack.c.l.bf16 %v562
      %vm564 = vcmask 125952
      %v565 = vsel %vm564, %v561, 0.0
      %566 = vadd.xlane.f32.xlu0 %v565
      %v567 = vpop.xlane.xlu0 %566
      %v568 = vmul.f32 %v563, %v567
      %vm569 = vcmask 257024
      %v570 = vsel %vm569, %v568, 0.0
      %v571 = vrot.slane %v570, 4
      %v572 = vadd.f32 %v570, %v571
      %v573 = vrot.slane %v572, 2
      %v574 = vadd.f32 %v572, %v573
      %v575 = vrot.slane %v574, 1
      %v576 = vadd.f32 %v574, %v575
      %v577 = vmul.f32 %v563, %v576
      %v578 = vsel %vm569, %v577, 0.0
      %579 = vadd.xlane.f32.xlu0 %v578
      %v580 = vpop.xlane.xlu0 %579
      %v581 = vmul.f32 %v561, %v580
      %v582 = vsel %vm564, %v581, 0.0
      %v583 = vrot.slane %v582, 4
      %v584 = vadd.f32 %v582, %v583
      %v585 = vrot.slane %v584, 2
      %v586 = vadd.f32 %v584, %v585
      %v587 = vrot.slane %v586, 1
      %v588 = vadd.f32 %v586, %v587
      %v589 = vmul.f32 %v588, %v588
      %v590 = vsel %vm447, %v589, 0.0
      %591 = vadd.xlane.f32.xlu0 %v590
      %v592 = vpop.xlane.xlu0 %591
      %v593 = vrsqrt.pop %v592
      %v594 = vmul.f32 %v592, %v593
      %vm595 = vcmp.eq.f32.partialorder %v592, inf
      %v596 = vsel %vm595, %v592, %v594
      %vm597 = vcmp.eq.f32.partialorder %v592, 0.0
      %v598 = vand.u32 %v592, 2147483648
      %v599 = vsel %vm597, %v598, %v596
      %v600 = vrsqrt.pop %v599
      %v601 = vmul.f32 %v599, %v600
      %vm602 = vcmp.eq.f32.partialorder %v599, inf
      %v603 = vsel %vm602, %v599, %v601
      %vm604 = vcmp.eq.f32.partialorder %v599, 0.0
      %v605 = vand.u32 %v599, 2147483648
      %v606 = vsel %vm604, %v605, %v603
      %v607 = vld [vmem:[%s422] sm:$0x3]
      %v608 = vunpack.c.l.bf16 %v607
      %v609 = vld [vmem:[%s426] sm:$0x3]
      %v610 = vunpack.c.l.bf16 %v609
      %v611 = vsel %vm564, %v608, 0.0
      %612 = vadd.xlane.f32.xlu0 %v611
      %v613 = vpop.xlane.xlu0 %612
      %v614 = vmul.f32 %v610, %v613
      %v615 = vsel %vm569, %v614, 0.0
      %v616 = vrot.slane %v615, 4
      %v617 = vadd.f32 %v615, %v616
      %v618 = vrot.slane %v617, 2
      %v619 = vadd.f32 %v617, %v618
      %v620 = vrot.slane %v619, 1
      %v621 = vadd.f32 %v619, %v620
      %v622 = vmul.f32 %v610, %v621
      %v623 = vsel %vm569, %v622, 0.0
      %624 = vadd.xlane.f32.xlu0 %v623
      %v625 = vpop.xlane.xlu0 %624
      %v626 = vmul.f32 %v608, %v625
      %v627 = vsel %vm564, %v626, 0.0
      %v628 = vrot.slane %v627, 4
      %v629 = vadd.f32 %v627, %v628
      %v630 = vrot.slane %v629, 2
      %v631 = vadd.f32 %v629, %v630
      %v632 = vrot.slane %v631, 1
      %v633 = vadd.f32 %v631, %v632
      %v634 = vmul.f32 %v633, %v633
      %v635 = vsel %vm447, %v634, 0.0
      %636 = vadd.xlane.f32.xlu0 %v635
      %v637 = vpop.xlane.xlu0 %636
      %v638 = vrsqrt.pop %v637
      %v639 = vmul.f32 %v637, %v638
      %vm640 = vcmp.eq.f32.partialorder %v637, inf
      %v641 = vsel %vm640, %v637, %v639
      %vm642 = vcmp.eq.f32.partialorder %v637, 0.0
      %v643 = vand.u32 %v637, 2147483648
      %v644 = vsel %vm642, %v643, %v641
      %v645 = vrsqrt.pop %v644
      %v646 = vmul.f32 %v644, %v645
      %vm647 = vcmp.eq.f32.partialorder %v644, inf
      %v648 = vsel %vm647, %v644, %v646
      %vm649 = vcmp.eq.f32.partialorder %v644, 0.0
      %v650 = vand.u32 %v644, 2147483648
      %v651 = vsel %vm649, %v650, %v648
      %v652 = vsub.f32 %v606, %v651
      %v653 = vmul.f32 %v652, %v652
      %v654 = vmul.f32 %v653, 0.015625
      %v655 = vadd.f32 %v559, %v654
      %vm656 = vcmask 0
      %657 = vst.msk [vmem:[%s429] sm:$0x1] %vm656, %v655
      %p658 = scmp.lt.s32.totalorder %s19, 1
      %s659 = scalar_select %p658, %s19, 1
      %s660 = scalar_lea.vmem %s8, %s659
      // Predicated region
      $region53: #{_lambda_.1} parent=51 // pred_check
        %p661 = pneg %p245
      $region54: #{_lambda_.1} parent=51 // pred_check_branch
        %663 = sbr.rel (%p661) target = $region56
      $region55: #{_lambda_.1} parent=51 // pred_region
        _
      $region56: #{_lambda_.1} parent=51 // pred_fallthru
        _
    $region52: #{_lambda_.1} parent=5 // pred_fallthru
      _
    %p664 = scmp.le.s32.totalorder 2, %s14
    // Predicated region
    $region57: #{_lambda_.1} parent=5 // pred_check
      %p665 = pneg %p664
    $region58: #{_lambda_.1} parent=5 // pred_check_branch
      %667 = sbr.rel (%p665) target = $region60
    $region59: #{_lambda_.1} parent=5 // pred_region
      %s668 = ssub.s32 %s14, 2
      // Predicated region
      $region61: #{_lambda_.1} parent=59 // pred_check
        %p669 = pneg %p251
      $region62: #{_lambda_.1} parent=59 // pred_check_branch
        %671 = sbr.rel (%p669) target = $region64
      $region63: #{_lambda_.1} parent=59 // pred_region
        %p672 = scmp.lt.s32.totalorder %s20, 1
        %s673 = scalar_select %p672, %s20, 1
        %s674 = scalar_lea.vmem %s8, %s673
      $region64: #{_lambda_.1} parent=59 // pred_fallthru
        _
    $region60: #{_lambda_.1} parent=5 // pred_fallthru
      _
  $region6: #{_lambda_.1} parent=0 // loop_footer
    %s18 = sadd.s32 1, %s14
  $region7: #{_lambda_.1} parent=0 // loop_footer_branch
    %13 = sbr.rel target = $region3
  $region8: #{_lambda_.1} parent=0 // loop_exit
    _

</llo_original>
